<compile_context>
chip_gen: v6e
topology: v6e:2x2x1
jax: 0.10.0
libtpu: 0.0.40
codegen_flags: <defaults>
</compile_context>

<pallas_src>
import jax
import jax.numpy as jnp
from jax.experimental import pallas as pl
from jax.experimental.pallas import tpu as pltpu

_LANE = 128
_SUBLANE = 8


def _round_up(n, m):
    return ((n + m - 1) // m) * m


def policy_net_kernel(x_ref, w1_ref, w2_ref, bias_ref, out_ref):
    """Fused PolicyNet forward for one (TB, D) batch tile.

    x_ref    : (TB, D)          f32 inputs
    w1_ref   : (D, RHP)         stacked, pre-transposed layer-1 weights (f32/bf16),
                                RHP = round_up(R*50, 128), padded cols are zero
    w2_ref   : (RHP, OW)        [block-diag layer-2 | fused actor | 0] (f32/bf16),
                                OW = round_up(R*A + A, 128)
    bias_ref : (1, RHP + OW)    f32: b1 (padded) | b2,ba' (padded)
    out_ref  : (TB, OW)         comb_flat at [:, :R*A], actor at [:, R*A:R*A+A]
    """
    rhp = w1_ref.shape[1]
    ow = w2_ref.shape[1]
    cdt = w1_ref.dtype                       # matmul operand dtype (f32 or bf16)

    x = x_ref[...].astype(cdt)               # (TB, D)
    b1 = bias_ref[:, :rhp]                   # (1, RHP) f32, lane-aligned slice
    b2 = bias_ref[:, rhp:rhp + ow]           # (1, OW)  f32, lane-aligned slice

    # Layer 1, all heads at once (MXU, f32 accumulate); bias + ReLU in f32 (VPU).
    h = jnp.dot(x, w1_ref[...], preferred_element_type=jnp.float32) + b1
    h = jnp.maximum(h, 0.0)                  # padded cols: relu(0 + 0) = 0

    # Layer 2 + actor in one matmul (padded weight rows/cols are zero).
    out = jnp.dot(h.astype(cdt), w2_ref[...],
                  preferred_element_type=jnp.float32) + b2

    out_ref[...] = out.astype(out_ref.dtype)   # single full-width lane-dense store


def pack_policy_net_params(w1, b1, w2, b2, wa, ba, param_dtype=jnp.float32):
    """One-time packing of PyTorch-layout parameters into kernel-friendly buffers.

    w1: (R, 50, D)   b1: (R, 50) or (R, 1, 50)
    w2: (R, A, 50)   b2: (R, A)  or (R, 1, A)
    wa: (A, R*A)     ba: (A,)    or (1, A)
    """
    r, h, d = w1.shape
    a = w2.shape[1]
    rh, ra = r * h, r * a
    rhp = _round_up(rh, _LANE)               # 150 -> 256
    ow = _round_up(ra + a, _LANE)            # comb_flat | actor | padding

    # Layer 1: heads stacked along the output dim, pre-transposed -> (D, RHP).
    w1s = jnp.zeros((d, rhp), jnp.float32)
    w1s = w1s.at[:, :rh].set(
        jnp.transpose(jnp.asarray(w1, jnp.float32), (2, 0, 1)).reshape(d, rh))

    # Layer 2: block-diagonal (RHP, R*A); block i = w2[i].T. Padded rows zero.
    w2b = jnp.zeros((rhp, ra), jnp.float32)
    for i in range(r):
        w2b = w2b.at[i * h:(i + 1) * h, i * a:(i + 1) * a].set(
            jnp.transpose(jnp.asarray(w2[i], jnp.float32)))

    wat = jnp.transpose(jnp.asarray(wa, jnp.float32))        # (R*A, A)
    b1f = jnp.reshape(jnp.asarray(b1, jnp.float32), (rh,))
    b2f = jnp.reshape(jnp.asarray(b2, jnp.float32), (ra,))
    baf = jnp.reshape(jnp.asarray(ba, jnp.float32), (a,))

    # Pre-fuse the actor head into layer 2 so both outputs depend only on h:
    #   actor = (h @ w2b + b2) @ wat + ba = h @ (w2b @ wat) + (b2 @ wat + ba)
    w2a = w2b @ wat                                          # (RHP, A)
    ba_fused = b2f @ wat + baf                               # (A,)

    # Pack [comb weights | actor weights | 0] -> (RHP, OW).
    w2p = jnp.zeros((rhp, ow), jnp.float32)
    w2p = w2p.at[:, :ra].set(w2b)
    w2p = w2p.at[:, ra:ra + a].set(w2a)

    # Biases packed into ONE f32 buffer: [b1 (RHP-wide) | b2,ba' (OW-wide)].
    bias = jnp.zeros((1, rhp + ow), jnp.float32)
    bias = bias.at[0, :rh].set(b1f)
    bias = bias.at[0, rhp:rhp + ra].set(b2f)
    bias = bias.at[0, rhp + ra:rhp + ra + a].set(ba_fused)

    pd = jnp.dtype(param_dtype)
    meta = (d, rhp, ra, a, ow)
    return (w1s.astype(pd), w2p.astype(pd), bias, meta)


def policy_net_forward(x, packed_params, *, max_batch_block=2048,
                       out_dtype=jnp.float32):
    """Runs the fused kernel.

    x: (D,) or (1, D) -> actor (A,), comb_policies (R, 1, A)   [PyTorch batch-1 semantics]
       (B, D), B > 1  -> actor (B, A), comb_policies (B, R, 1, A)
                         (each row independently follows the module's semantics).
    """
    w1s, w2p, bias, (d, rhp, ra, a, ow) = packed_params
    r = ra // a

    single = (x.ndim == 1) or (x.ndim == 2 and x.shape[0] == 1)
    x2 = jnp.asarray(x, jnp.float32).reshape(-1, d)
    b = x2.shape[0]

    # Batch tiling: sublane-aligned, large tiles to amortize per-step overhead;
    # for large B keep at least 2 grid steps so v7x's two TensorCores both work.
    tb = min(max_batch_block, _round_up(b, _SUBLANE))
    if b > _SUBLANE:
        tb = min(tb, _round_up(pl.cdiv(b, 2), _SUBLANE))
    bp = _round_up(b, tb)
    if bp != b:
        x2 = jnp.pad(x2, ((0, bp - b), (0, 0)))
    grid = (bp // tb,)

    itemsize = jnp.dtype(w1s.dtype).itemsize
    flops = 2 * bp * (d * rhp + rhp * ow)
    bytes_accessed = (x2.size * 4 + (w1s.size + w2p.size) * itemsize
                      + bias.size * 4 + bp * ow * jnp.dtype(out_dtype).itemsize)

    out = pl.pallas_call(
        policy_net_kernel,
        out_shape=jax.ShapeDtypeStruct((bp, ow), out_dtype),
        grid=grid,
        in_specs=[
            pl.BlockSpec((tb, d), lambda i: (i, 0)),       # x: one batch tile per step
            pl.BlockSpec(w1s.shape, lambda i: (0, 0)),     # weights / bias stay resident
            pl.BlockSpec(w2p.shape, lambda i: (0, 0)),
            pl.BlockSpec(bias.shape, lambda i: (0, 0)),
        ],
        out_specs=pl.BlockSpec((tb, ow), lambda i: (i, 0)),
        compiler_params=pltpu.CompilerParams(
            dimension_semantics=("parallel",)),
        cost_estimate=pl.CostEstimate(
            flops=int(flops), transcendentals=0,
            bytes_accessed=int(bytes_accessed)),
    )(x2, w1s, w2p, bias)

    comb_flat = out[:b, :ra]                 # == torch stack(...).view(R*A) per row
    actor = out[:b, ra:ra + a]
    comb = comb_flat.reshape(b, r, 1, a)     # torch comb_policies is (R, 1, A) per sample

    if single:
        return actor.reshape(a), comb.reshape(r, 1, a)
    return actor, comb


def _reference_forward_single(x, w1, b1, w2, b2, wa, ba):
    """Pure-JAX reference matching the PyTorch module for one sample x: (D,)."""
    r = w1.shape[0]
    outs = []
    for i in range(r):
        hh = jnp.maximum(x @ w1[i].T + jnp.reshape(b1[i], (-1,)), 0.0)
        outs.append(hh @ w2[i].T + jnp.reshape(b2[i], (-1,)))
    comb = jnp.stack(outs)[:, None, :]       # (R, 1, A)
    flat = comb.reshape(-1)                  # r-major flatten == torch .view(R*A)
    actor = flat @ wa.T + jnp.reshape(ba, (-1,))
    return actor, comb


if __name__ == "__main__":
    # Shapes consistent with the module: hidden=50 hard-coded, small D / A / R.
    input_size, hidden, actions, reward_types = 32, 50, 4, 3
    batch = 8

    key = jax.random.PRNGKey(0)
    kx, k1, k2, k3, k4, k5 = jax.random.split(key, 6)

    x = jax.random.normal(kx, (batch, input_size), dtype=jnp.float32)
    w1 = 0.1 * jax.random.normal(k1, (reward_types, hidden, input_size), dtype=jnp.float32)
    b1 = 0.1 * jax.random.normal(k2, (reward_types, hidden), dtype=jnp.float32)
    w2 = 0.1 * jax.random.normal(k3, (reward_types, actions, hidden), dtype=jnp.float32)
    b2 = 0.1 * jax.random.normal(k4, (reward_types, actions), dtype=jnp.float32)
    wa = 0.01 * jax.random.normal(k5, (actions, reward_types * actions), dtype=jnp.float32)
    ba = jnp.zeros((actions,), dtype=jnp.float32)    # actor bias .fill_(0) as in __init__

    # Pure-JAX per-sample reference.
    refs = [_reference_forward_single(x[i], w1, b1, w2, b2, wa, ba) for i in range(batch)]
    ref_actor = jnp.stack([ra_ for ra_, _ in refs])           # (B, A)
    ref_comb = jnp.stack([rc_ for _, rc_ in refs])            # (B, R, 1, A)

    # --- f32 weights ---------------------------------------------------------
    params_f32 = pack_policy_net_params(w1, b1, w2, b2, wa, ba, param_dtype=jnp.float32)
    actor, comb = policy_net_forward(x, params_f32)
    jax.block_until_ready((actor, comb))
    assert actor.shape == (batch, actions)
    assert comb.shape == (batch, reward_types, 1, actions)
    assert jnp.allclose(actor, ref_actor, atol=1e-4, rtol=1e-4)
    assert jnp.allclose(comb, ref_comb, atol=1e-4, rtol=1e-4)

    # --- bf16 weights (native MXU operand path; f32 accumulate) ---------------
    params_bf16 = pack_policy_net_params(w1, b1, w2, b2, wa, ba, param_dtype=jnp.bfloat16)
    actor_bf, comb_bf = policy_net_forward(x, params_bf16)
    jax.block_until_ready((actor_bf, comb_bf))
    assert jnp.allclose(actor_bf, ref_actor, atol=5e-2, rtol=5e-2)
    assert jnp.allclose(comb_bf, ref_comb, atol=5e-2, rtol=5e-2)

    # --- single-sample call (the shape the PyTorch module actually supports) --
    a1, c1 = policy_net_forward(x[0], params_f32)
    jax.block_until_ready((a1, c1))
    assert a1.shape == (actions,) and c1.shape == (reward_types, 1, actions)
    assert jnp.allclose(a1, ref_actor[0], atol=1e-4, rtol=1e-4)
    assert jnp.allclose(c1, ref_comb[0], atol=1e-4, rtol=1e-4)

    # --- larger batch to exercise the multi-step (grid >= 2) path -------------
    xb = jax.random.normal(kx, (4096, input_size), dtype=jnp.float32)
    ab, cb = policy_net_forward(xb, params_f32)
    jax.block_until_ready((ab, cb))
    refs_b = [_reference_forward_single(xb[i], w1, b1, w2, b2, wa, ba) for i in range(4)]
    assert jnp.allclose(ab[:4], jnp.stack([r0 for r0, _ in refs_b]), atol=1e-4, rtol=1e-4)
    assert jnp.allclose(cb[:4], jnp.stack([c0 for _, c0 in refs_b]), atol=1e-4, rtol=1e-4)

    print("KERNEL_OK")
</pallas_src>

<mosaic_0001>
module attributes {stable_mosaic.version = 11 : i64} {
  func.func @policy_net_kernel(%arg0: i32, %arg1: memref<8x32xf32, #tpu.memory_space<vmem>>, %arg2: memref<32x256xf32, #tpu.memory_space<vmem>>, %arg3: memref<256x128xf32, #tpu.memory_space<vmem>>, %arg4: memref<1x384xf32, #tpu.memory_space<vmem>>, %arg5: memref<8x128xf32, #tpu.memory_space<vmem>>) attributes {dimension_semantics = [#tpu.dimension_semantics<parallel>], iteration_bounds = array<i64: 1>, scalar_prefetch = 0 : i64, scratch_operands = 0 : i64, tpu.core_type = #tpu.core_type<tc>, window_params = [{transform_indices = @transform_0, window_bounds = array<i64: 8, 32>}, {pipeline_mode = #tpu.pipeline_mode<synchronous>, transform_indices = @transform_1, window_bounds = array<i64: 32, 256>}, {pipeline_mode = #tpu.pipeline_mode<synchronous>, transform_indices = @transform_2, window_bounds = array<i64: 256, 128>}, {pipeline_mode = #tpu.pipeline_mode<synchronous>, transform_indices = @transform_3, window_bounds = array<i64: 1, 384>}, {transform_indices = @transform_4, window_bounds = array<i64: 8, 128>}]} {
    %c0 = arith.constant 0 : index
    %c0_0 = arith.constant 0 : index
    %0 = vector.load %arg1[%c0, %c0_0] : memref<8x32xf32, #tpu.memory_space<vmem>>, vector<8x32xf32>
    %c0_1 = arith.constant 0 : index
    %c0_2 = arith.constant 0 : index
    %1 = vector.load %arg4[%c0_1, %c0_2] : memref<1x384xf32, #tpu.memory_space<vmem>>, vector<1x256xf32>
    %c0_3 = arith.constant 0 : index
    %c256 = arith.constant 256 : index
    %2 = vector.load %arg4[%c0_3, %c256] : memref<1x384xf32, #tpu.memory_space<vmem>>, vector<1x128xf32>
    %c0_4 = arith.constant 0 : index
    %c0_5 = arith.constant 0 : index
    %3 = vector.load %arg2[%c0_4, %c0_5] : memref<32x256xf32, #tpu.memory_space<vmem>>, vector<32x256xf32>
    %cst = arith.constant dense<0.000000e+00> : vector<8x256xf32>
    %4 = tpu.matmul %0, %3, %cst {dimension_numbers = #tpu.dot_dimension_numbers<[1], [0], [0], [1], [0, 0, 1, 1], [], []>} : vector<8x32xf32>, vector<32x256xf32>, vector<8x256xf32> -> vector<8x256xf32>
    %5 = vector.broadcast %1 : vector<1x256xf32> to vector<8x256xf32>
    %6 = arith.addf %4, %5 : vector<8x256xf32>
    %cst_6 = arith.constant 0.000000e+00 : f32
    %7 = vector.broadcast %cst_6 : f32 to vector<8x256xf32>
    %8 = arith.maximumf %6, %7 : vector<8x256xf32>
    %c0_7 = arith.constant 0 : index
    %c0_8 = arith.constant 0 : index
    %9 = vector.load %arg3[%c0_7, %c0_8] : memref<256x128xf32, #tpu.memory_space<vmem>>, vector<256x128xf32>
    %cst_9 = arith.constant dense<0.000000e+00> : vector<8x128xf32>
    %10 = tpu.matmul %8, %9, %cst_9 {dimension_numbers = #tpu.dot_dimension_numbers<[1], [0], [0], [1], [0, 0, 1, 1], [], []>} : vector<8x256xf32>, vector<256x128xf32>, vector<8x128xf32> -> vector<8x128xf32>
    %11 = vector.broadcast %2 : vector<1x128xf32> to vector<8x128xf32>
    %12 = arith.addf %10, %11 : vector<8x128xf32>
    %c0_10 = arith.constant 0 : index
    %c0_11 = arith.constant 0 : index
    %13 = vector.load %arg5[%c0_10, %c0_11] : memref<8x128xf32, #tpu.memory_space<vmem>>, vector<8x128xf32>
    tpu.vector_store %arg5[%c0_10, %c0_11], %12 {strides = array<i32>} : memref<8x128xf32, #tpu.memory_space<vmem>>, vector<8x128xf32>,
    return
  }
  func.func @transform_0(%arg0: i32) -> (i32, i32) {
    %c0_i32 = arith.constant 0 : i32
    %c0_i32_0 = arith.constant 0 : i32
    return %arg0, %c0_i32 : i32, i32
  }
  func.func @transform_1(%arg0: i32) -> (i32, i32) {
    %c0_i32 = arith.constant 0 : i32
    %c0_i32_0 = arith.constant 0 : i32
    %c0_i32_1 = arith.constant 0 : i32
    return %c0_i32, %c0_i32_0 : i32, i32
  }
  func.func @transform_2(%arg0: i32) -> (i32, i32) {
    %c0_i32 = arith.constant 0 : i32
    %c0_i32_0 = arith.constant 0 : i32
    %c0_i32_1 = arith.constant 0 : i32
    return %c0_i32, %c0_i32_0 : i32, i32
  }
  func.func @transform_3(%arg0: i32) -> (i32, i32) {
    %c0_i32 = arith.constant 0 : i32
    %c0_i32_0 = arith.constant 0 : i32
    %c0_i32_1 = arith.constant 0 : i32
    return %c0_i32, %c0_i32_0 : i32, i32
  }
  func.func @transform_4(%arg0: i32) -> (i32, i32) {
    %c0_i32 = arith.constant 0 : i32
    %c0_i32_0 = arith.constant 0 : i32
    return %arg0, %c0_i32 : i32, i32
  }
}

</mosaic_0001>

<llo_original>
// kernel: tpu_custom_call.1
$region0: #{tpu_custom_call.1}
  #allocation0 [shape = 'u32[]', space=smem, size = 0x4, offset = 0x4, fixed_abs, tag = 'smem constant byte address 0x4 - core index']
  #allocation1 [shape = 'u32[144,128]{1,0:T(1,128)}', space=vmem, size = 0x12000, scoped, tag = 'internal scratch']
  %s0 = inlined_call_operand.hbm [shape: f32[8,32], index: 0, kind: input, shape index: {}]
  %s1 = inlined_call_operand.hbm [shape: f32[32,256], index: 1, kind: input, shape index: {}]
  %s2 = inlined_call_operand.hbm [shape: f32[256,128], index: 2, kind: input, shape index: {}]
  %s3 = inlined_call_operand.vmem [shape: f32[1,384], index: 3, kind: input, shape index: {}]
  %s4 = inlined_call_operand.hbm [shape: f32[8,128], index: 4, kind: output, shape index: {}]
  %s5 = sld [smem:[#allocation0]]
  $region38: #{tpu_custom_call.1} parent=0
    _
  %s7 = ssub.s32 1, %s5
  %s8 = scalar_select 0, %s7, %s5
  $region1: #{tpu_custom_call.1} parent=0
    #allocation2 [shape = 'u8[4096]{0}', space=vmem, size = 0x1000, scoped, tag = 'input window, operand 0, single buffered']
    #allocation3 [shape = 's32[1]{0}', space=sflag, size = 0x4, scoped, tag = 'scoped memory for tpu_custom_call.1']
    #allocation4 [shape = 's32[1]{0}', space=sflag, size = 0x4, scoped, tag = 'scoped memory for tpu_custom_call.1']
    #allocation5 [shape = 'u8[32768]{0}', space=vmem, size = 0x8000, scoped, tag = 'input window, operand 1, single buffered']
    #allocation6 [shape = 's32[1]{0}', space=sflag, size = 0x4, scoped, tag = 'scoped memory for tpu_custom_call.1']
    #allocation7 [shape = 'u8[131072]{0}', space=vmem, size = 0x20000, scoped, tag = 'input window, operand 2, single buffered']
    #allocation8 [shape = 'u8[4096]{0}', space=vmem, size = 0x1000, scoped, tag = 'output window, operand 0, single buffered']
    %9 = vsyncpa [#allocation3], 0
    %10 = vsyncpa [#allocation6], 0
    %11 = vsyncpa [#allocation4], 0
    // Predicated region
    $region2: #{tpu_custom_call.1} parent=1 // pred_check
      _
    $region3: #{tpu_custom_call.1} parent=1 // pred_check_branch
      %13 = sbr.rel (0) target = $region5
    $region4: #{tpu_custom_call.1} parent=1 // pred_region
      %s15 = ssub.s32 128, 128
      %16 = vsyncadd [#allocation3], %s15
      %s18 = sshll.u32 [#allocation2], 4
      %s19 = int_to_ptr.vmem [resolvable:$true] %s18
      %21 = dma.hbm_to_vmem [thread:$0]  %s0, 128, %s19, [#allocation3]
    $region5: #{tpu_custom_call.1} parent=1 // pred_fallthru
      _
    // Predicated region
    $region6: #{tpu_custom_call.1} parent=1 // pred_check
      _
    $region7: #{tpu_custom_call.1} parent=1 // pred_check_branch
      %23 = sbr.rel (0) target = $region9
    $region8: #{tpu_custom_call.1} parent=1 // pred_region
      %s25 = ssub.s32 1024, 1024
      %26 = vsyncadd [#allocation6], %s25
      %s27 = sshll.u32 [#allocation5], 4
      %s28 = int_to_ptr.vmem [resolvable:$true] %s27
      %33 = dma.hbm_to_vmem [thread:$0]  %s1, 1024, %s28, [#allocation6], 256, 256, 16
    $region9: #{tpu_custom_call.1} parent=1 // pred_fallthru
      _
    // Predicated region
    $region10: #{tpu_custom_call.1} parent=1 // pred_check
      _
    $region11: #{tpu_custom_call.1} parent=1 // pred_check_branch
      %35 = sbr.rel (0) target = $region13
    $region12: #{tpu_custom_call.1} parent=1 // pred_region
      %s37 = ssub.s32 4096, 4096
      %38 = vsyncadd [#allocation6], %s37
      %s39 = sshll.u32 [#allocation7], 4
      %s40 = int_to_ptr.vmem [resolvable:$true] %s39
      %45 = dma.hbm_to_vmem [thread:$0]  %s2, 4096, %s40, [#allocation6], 128, 128, 8
    $region13: #{tpu_custom_call.1} parent=1 // pred_fallthru
      _
    // Predicated region
    $region14: #{tpu_custom_call.1} parent=1 // pred_check
      _
    $region15: #{tpu_custom_call.1} parent=1 // pred_check_branch
      %47 = sbr.rel (0) target = $region17
    $region16: #{tpu_custom_call.1} parent=1 // pred_region
      _
    $region17: #{tpu_custom_call.1} parent=1 // pred_fallthru
      _
    // Predicated region
    $region18: #{tpu_custom_call.1} parent=1 // pred_check
      _
    $region19: #{tpu_custom_call.1} parent=1 // pred_check_branch
      %49 = sbr.rel (0) target = $region21
    $region20: #{tpu_custom_call.1} parent=1 // pred_region
      %50 = dma.done [#allocation3], 128
    $region21: #{tpu_custom_call.1} parent=1 // pred_fallthru
      _
    // Predicated region
    $region22: #{tpu_custom_call.1} parent=1 // pred_check
      _
    $region23: #{tpu_custom_call.1} parent=1 // pred_check_branch
      %52 = sbr.rel (0) target = $region25
    $region24: #{tpu_custom_call.1} parent=1 // pred_region
      %53 = dma.done [#allocation6], 1024
    $region25: #{tpu_custom_call.1} parent=1 // pred_fallthru
      _
    // Predicated region
    $region26: #{tpu_custom_call.1} parent=1 // pred_check
      _
    $region27: #{tpu_custom_call.1} parent=1 // pred_check_branch
      %55 = sbr.rel (0) target = $region29
    $region28: #{tpu_custom_call.1} parent=1 // pred_region
      %56 = dma.done [#allocation6], 4096
    $region29: #{tpu_custom_call.1} parent=1 // pred_fallthru
      _
    %v57 = vld [vmem:[#allocation2] sm:$0xff]
    %v58 = vld [vmem:[%s3] sm:$0x3]
    %v59 = vld [vmem:[%s3 + $0x2] sm:$0x1]
    %v60 = vld [vmem:[#allocation5] sm:$0xff]
    %v61 = vld [vmem:[#allocation5 + $0x8] sm:$0xff]
    %v62 = vld [vmem:[#allocation5 + $0x10] sm:$0xff]
    %v63 = vld [vmem:[#allocation5 + $0x18] sm:$0xff]
    %v64 = vld [vmem:[#allocation5 + $0x20] sm:$0xff]
    %v65 = vld [vmem:[#allocation5 + $0x28] sm:$0xff]
    %v66 = vld [vmem:[#allocation5 + $0x30] sm:$0xff]
    %v67 = vld [vmem:[#allocation5 + $0x38] sm:$0xff]
    %v69 = vlaneseq
    %v70 = vshrl.u32 %v69, 7
    %v71 = vsub.s32 0, %v70
    %v72 = vrot.slane %v58, %v71
    %v73 = vlaneseq
    %v74 = vshrl.u32 %v73, 7
    %v75 = vsub.s32 1, %v74
    %v76 = vrot.slane %v58, %v75
    %vm79 = vcmask 261120
    %v81 = vsel %vm79, %v57, 0
    %83 = vmatprep.subr.mxu0 0.0
    %84 = vmatpush1.msra.mxu0 0.0
    %85 = vmatprep.subr.mxu0 0.0
    %86 = vmatpush1.msra.mxu0 0.0
    %87 = vmatprep.subr.mxu0 0.0
    %88 = vmatpush1.msra.mxu0 0.0
    %89 = vmatprep.subr.mxu0 0.0
    %90 = vmatpush1.msra.mxu0 0.0
    %91 = vmatprep.subr.mxu0 0.0
    %92 = vmatpush1.msra.mxu0 0.0
    %93 = vmatprep.subr.mxu0 0.0
    %94 = vmatpush1.msra.mxu0 0.0
    %95 = vmatprep.subr.mxu0 0.0
    %96 = vmatpush1.msra.mxu0 0.0
    %97 = vmatprep.subr.mxu0 0.0
    %98 = vmatpush1.msra.mxu0 0.0
    %99 = vmatprep.subr.mxu0 0.0
    %100 = vmatpush1.msra.mxu0 0.0
    %101 = vmatprep.subr.mxu0 0.0
    %102 = vmatpush1.msra.mxu0 0.0
    %103 = vmatprep.subr.mxu0 0.0
    %104 = vmatpush1.msra.mxu0 0.0
    %105 = vmatprep.subr.mxu0 0.0
    %106 = vmatpush1.msra.mxu0 0.0
    %107 = vmatprep.subr.mxu0 %v67
    %108 = vmatpush1.msra.mxu0 %v66
    %109 = vmatprep.subr.mxu0 %v65
    %110 = vmatpush1.msra.mxu0 %v64
    %111 = vmatprep.subr.mxu0 %v63
    %112 = vmatpush1.msra.mxu0 %v62
    %113 = vmatprep.subr.mxu0 %v61
    %114 = vmatpush1.msra.mxu0 %v60
    %115 = vmatprep.subr.mxu0 0.0
    %116 = vmatpush2.msra.mxu0 0.0
    %117 = vmatprep.subr.mxu0 0.0
    %118 = vmatpush2.msra.mxu0 0.0
    %119 = vmatprep.subr.mxu0 0.0
    %120 = vmatpush2.msra.mxu0 0.0
    %121 = vmatprep.subr.mxu0 0.0
    %122 = vmatpush2.msra.mxu0 0.0
    %123 = vmatprep.subr.mxu0 0.0
    %124 = vmatpush2.msra.mxu0 0.0
    %125 = vmatprep.subr.mxu0 0.0
    %126 = vmatpush2.msra.mxu0 0.0
    %127 = vmatprep.subr.mxu0 0.0
    %128 = vmatpush2.msra.mxu0 0.0
    %129 = vmatprep.subr.mxu0 0.0
    %130 = vmatpush2.msra.mxu0 0.0
    %131 = vmatprep.subr.mxu0 0.0
    %132 = vmatpush2.msra.mxu0 0.0
    %133 = vmatprep.subr.mxu0 0.0
    %134 = vmatpush2.msra.mxu0 0.0
    %135 = vmatprep.subr.mxu0 0.0
    %136 = vmatpush2.msra.mxu0 0.0
    %137 = vmatprep.subr.mxu0 0.0
    %138 = vmatpush2.msra.mxu0 0.0
    %139 = vmatprep.subr.mxu0 0.0
    %140 = vmatpush2.msra.mxu0 0.0
    %141 = vmatprep.subr.mxu0 0.0
    %142 = vmatpush2.msra.mxu0 0.0
    %143 = vmatprep.subr.mxu0 0.0
    %144 = vmatpush2.msra.mxu0 0.0
    %145 = vmatprep.subr.mxu0 0.0
    %146 = vmatpush2.msra.mxu0 0.0
    %147 = vmatprep.mubr.f32.mxu0 0.0
    %148 = vmatmul.mubr.f32.gmra.mxu0 %v81
    %v149 = vpop.f32.mrf.mxu0
    %v150 = vadd.f32 %v72, %v149
    %v151 = vpop.f32.mrf.mxu0
    %v152 = vadd.f32 %v76, %v151
    %153 = vdwg.mxu0
    %v154 = vmax.f32 %v150, 0.0
    %v155 = vmax.f32 %v152, 0.0
    %v156 = vld [vmem:[#allocation7] sm:$0xff]
    %v157 = vld [vmem:[#allocation7 + $0x8] sm:$0xff]
    %v158 = vld [vmem:[#allocation7 + $0x10] sm:$0xff]
    %v159 = vld [vmem:[#allocation7 + $0x18] sm:$0xff]
    %v160 = vld [vmem:[#allocation7 + $0x20] sm:$0xff]
    %v161 = vld [vmem:[#allocation7 + $0x28] sm:$0xff]
    %v162 = vld [vmem:[#allocation7 + $0x30] sm:$0xff]
    %v163 = vld [vmem:[#allocation7 + $0x38] sm:$0xff]
    %v164 = vld [vmem:[#allocation7 + $0x40] sm:$0xff]
    %v165 = vld [vmem:[#allocation7 + $0x48] sm:$0xff]
    %v166 = vld [vmem:[#allocation7 + $0x50] sm:$0xff]
    %v167 = vld [vmem:[#allocation7 + $0x58] sm:$0xff]
    %v168 = vld [vmem:[#allocation7 + $0x60] sm:$0xff]
    %v169 = vld [vmem:[#allocation7 + $0x68] sm:$0xff]
    %v170 = vld [vmem:[#allocation7 + $0x70] sm:$0xff]
    %v171 = vld [vmem:[#allocation7 + $0x78] sm:$0xff]
    %v172 = vld [vmem:[#allocation7 + $0x80] sm:$0xff]
    %v173 = vld [vmem:[#allocation7 + $0x88] sm:$0xff]
    %v174 = vld [vmem:[#allocation7 + $0x90] sm:$0xff]
    %v175 = vld [vmem:[#allocation7 + $0x98] sm:$0xff]
    %v176 = vld [vmem:[#allocation7 + $0xa0] sm:$0xff]
    %v177 = vld [vmem:[#allocation7 + $0xa8] sm:$0xff]
    %v178 = vld [vmem:[#allocation7 + $0xb0] sm:$0xff]
    %v179 = vld [vmem:[#allocation7 + $0xb8] sm:$0xff]
    %v180 = vld [vmem:[#allocation7 + $0xc0] sm:$0xff]
    %v181 = vld [vmem:[#allocation7 + $0xc8] sm:$0xff]
    %v182 = vld [vmem:[#allocation7 + $0xd0] sm:$0xff]
    %v183 = vld [vmem:[#allocation7 + $0xd8] sm:$0xff]
    %v184 = vld [vmem:[#allocation7 + $0xe0] sm:$0xff]
    %v185 = vld [vmem:[#allocation7 + $0xe8] sm:$0xff]
    %v186 = vld [vmem:[#allocation7 + $0xf0] sm:$0xff]
    %v187 = vld [vmem:[#allocation7 + $0xf8] sm:$0xff]
    %v189 = vlaneseq
    %v190 = vshrl.u32 %v189, 7
    %v191 = vsub.s32 0, %v190
    %v192 = vrot.slane %v59, %v191
    %194 = vmatprep.subr.mxu0 0.0
    %195 = vmatpush1.msra.mxu0 %v171
    %196 = vmatprep.subr.mxu0 0.0
    %197 = vmatpush1.msra.mxu0 %v170
    %198 = vmatprep.subr.mxu0 0.0
    %199 = vmatpush1.msra.mxu0 %v169
    %200 = vmatprep.subr.mxu0 0.0
    %201 = vmatpush1.msra.mxu0 %v168
    %202 = vmatprep.subr.mxu0 0.0
    %203 = vmatpush1.msra.mxu0 %v167
    %204 = vmatprep.subr.mxu0 0.0
    %205 = vmatpush1.msra.mxu0 %v166
    %206 = vmatprep.subr.mxu0 0.0
    %207 = vmatpush1.msra.mxu0 %v165
    %208 = vmatprep.subr.mxu0 0.0
    %209 = vmatpush1.msra.mxu0 %v164
    %210 = vmatprep.subr.mxu0 0.0
    %211 = vmatpush1.msra.mxu0 %v163
    %212 = vmatprep.subr.mxu0 0.0
    %213 = vmatpush1.msra.mxu0 %v162
    %214 = vmatprep.subr.mxu0 0.0
    %215 = vmatpush1.msra.mxu0 %v161
    %216 = vmatprep.subr.mxu0 0.0
    %217 = vmatpush1.msra.mxu0 %v160
    %218 = vmatprep.subr.mxu0 0.0
    %219 = vmatpush1.msra.mxu0 %v159
    %220 = vmatprep.subr.mxu0 0.0
    %221 = vmatpush1.msra.mxu0 %v158
    %222 = vmatprep.subr.mxu0 0.0
    %223 = vmatpush1.msra.mxu0 %v157
    %224 = vmatprep.subr.mxu0 0.0
    %225 = vmatpush1.msra.mxu0 %v156
    %226 = vmatprep.subr.mxu0 0.0
    %227 = vmatpush2.msra.mxu0 %v187
    %228 = vmatprep.subr.mxu0 0.0
    %229 = vmatpush2.msra.mxu0 %v186
    %230 = vmatprep.subr.mxu0 0.0
    %231 = vmatpush2.msra.mxu0 %v185
    %232 = vmatprep.subr.mxu0 0.0
    %233 = vmatpush2.msra.mxu0 %v184
    %234 = vmatprep.subr.mxu0 0.0
    %235 = vmatpush2.msra.mxu0 %v183
    %236 = vmatprep.subr.mxu0 0.0
    %237 = vmatpush2.msra.mxu0 %v182
    %238 = vmatprep.subr.mxu0 0.0
    %239 = vmatpush2.msra.mxu0 %v181
    %240 = vmatprep.subr.mxu0 0.0
    %241 = vmatpush2.msra.mxu0 %v180
    %242 = vmatprep.subr.mxu0 0.0
    %243 = vmatpush2.msra.mxu0 %v179
    %244 = vmatprep.subr.mxu0 0.0
    %245 = vmatpush2.msra.mxu0 %v178
    %246 = vmatprep.subr.mxu0 0.0
    %247 = vmatpush2.msra.mxu0 %v177
    %248 = vmatprep.subr.mxu0 0.0
    %249 = vmatpush2.msra.mxu0 %v176
    %250 = vmatprep.subr.mxu0 0.0
    %251 = vmatpush2.msra.mxu0 %v175
    %252 = vmatprep.subr.mxu0 0.0
    %253 = vmatpush2.msra.mxu0 %v174
    %254 = vmatprep.subr.mxu0 0.0
    %255 = vmatpush2.msra.mxu0 %v173
    %256 = vmatprep.subr.mxu0 0.0
    %257 = vmatpush2.msra.mxu0 %v172
    %258 = vmatprep.mubr.f32.mxu0 %v155
    %259 = vmatmul.mubr.f32.gmra.mxu0 %v154
    %v260 = vpop.f32.mrf.mxu0
    %v261 = vadd.f32 %v192, %v260
    %v262 = vpop.f32.mrf.mxu0
    %263 = vdwg.mxu0
    %264 = vst [vmem:[#allocation8] sm:$0xff] %v261
    // Predicated region
    $region30: #{tpu_custom_call.1} parent=1 // pred_check
      _
    $region31: #{tpu_custom_call.1} parent=1 // pred_check_branch
      %266 = sbr.rel (0) target = $region33
    $region32: #{tpu_custom_call.1} parent=1 // pred_region
      %s268 = ssub.s32 128, 128
      %269 = vsyncadd [#allocation4], %s268
      %s271 = sshll.u32 [#allocation8], 4
      %s272 = int_to_ptr.vmem [resolvable:$true] %s271
      %274 = dma.vmem_to_hbm [thread:$0]  %s272, 128, %s4, [#allocation4]
    $region33: #{tpu_custom_call.1} parent=1 // pred_fallthru
      _
    // Predicated region
    $region34: #{tpu_custom_call.1} parent=1 // pred_check
      _
    $region35: #{tpu_custom_call.1} parent=1 // pred_check_branch
      %276 = sbr.rel (0) target = $region37
    $region36: #{tpu_custom_call.1} parent=1 // pred_region
      %277 = dma.done [#allocation4], 128
    $region37: #{tpu_custom_call.1} parent=1 // pred_fallthru
      _
    %278 = vsyncpa [#allocation3], 1
    %279 = vsyncpa [#allocation6], 1
    %280 = vsyncpa [#allocation4], 1

</llo_original>
